<compile_context>
chip_gen: v5e
topology: v5e:2x2
jax: 0.10.0
libtpu: 0.0.40
codegen_flags: <defaults>
</compile_context>

<pallas_src>
import jax
import jax.numpy as jnp
from jax.experimental import pallas as pl
from jax.experimental.pallas import tpu as pltpu  # noqa: F401  (TPU backend)


# ---------------------------------------------------------------------------
# Pallas kernels (fully fused forward pass)
# ---------------------------------------------------------------------------
def _mlp_attn_kernel(x_ref, w1_ref, b1_ref, wa_ref, ba_ref, w2_ref, b2_ref,
                     out_ref):
    """fc1 -> ReLU -> attention_fc -> softmax(dim=0) -> fc2 in one kernel."""
    x = x_ref[...]                                                # (B, In) bf16
    # fc1: (B,In) @ (In,H) -> f32
    h = jnp.dot(x, w1_ref[...],
                preferred_element_type=jnp.float32) + b1_ref[...]
    h = jnp.maximum(h, 0.0)                                       # ReLU (f32)

    # attention_fc: (B,H) @ (H,H) -> f32 scores
    a = jnp.dot(h.astype(jnp.bfloat16), wa_ref[...],
                preferred_element_type=jnp.float32) + ba_ref[...]

    # softmax over dim=0 (batch axis), exactly like F.softmax(..., dim=0).
    # All in f32; exact divide (abundant VPU slack at this size).
    m = jnp.max(a, axis=0, keepdims=True)
    e = jnp.exp(a - m)
    s = jnp.sum(e, axis=0, keepdims=True)
    p = e / s

    # fc2: (B,H) @ (H,Cpad) -> lane-dense (B,128) f32 store
    out_ref[...] = jnp.dot(p.astype(jnp.bfloat16), w2_ref[...],
                           preferred_element_type=jnp.float32) + b2_ref[...]


def _mlp_plain_kernel(x_ref, w1_ref, b1_ref, w2_ref, b2_ref, out_ref):
    """fc1 -> ReLU -> fc2 (attention=False path)."""
    x = x_ref[...]
    h = jnp.dot(x, w1_ref[...],
                preferred_element_type=jnp.float32) + b1_ref[...]
    h = jnp.maximum(h, 0.0)
    out_ref[...] = jnp.dot(h.astype(jnp.bfloat16), w2_ref[...],
                           preferred_element_type=jnp.float32) + b2_ref[...]


# ---------------------------------------------------------------------------
# Parameter preparation: done ONCE, outside the per-call path.
# Converts PyTorch-layout (out, in) f32 weights into MXU-native (in, out)
# bf16 weights, f32 (1, out) biases, and pads fc2 to 128 output lanes.
# ---------------------------------------------------------------------------
_LANE = 128


def prep_params(torch_params, attention):
    H = torch_params['w1'].shape[0]
    C = torch_params['w2'].shape[0]
    Cpad = max(_LANE, ((C + _LANE - 1) // _LANE) * _LANE)

    w2_t = torch_params['w2'].T.astype(jnp.float32)              # (H, C)
    w2_pad = jnp.zeros((H, Cpad), jnp.float32).at[:, :C].set(w2_t)
    b2_pad = jnp.zeros((1, Cpad), jnp.float32).at[0, :C].set(
        torch_params['b2'].astype(jnp.float32))

    p = {
        'w1': torch_params['w1'].T.astype(jnp.bfloat16),          # (In, H)
        'b1': torch_params['b1'].reshape(1, H).astype(jnp.float32),
        'w2': w2_pad.astype(jnp.bfloat16),                        # (H, Cpad)
        'b2': b2_pad,                                             # (1, Cpad) f32
        'class_num': C,
        'c_pad': Cpad,
    }
    if attention:
        p['wa'] = torch_params['wa'].T.astype(jnp.bfloat16)       # (H, H)
        p['ba'] = torch_params['ba'].reshape(1, H).astype(jnp.float32)
    return p


# ---------------------------------------------------------------------------
# Wrapper
# ---------------------------------------------------------------------------
def _full_spec(shape):
    # whole-array blocks (exempt from the (8,128) divisibility rule)
    return pl.BlockSpec(shape, lambda *_: (0,) * len(shape))


def mlp_forward(x, p, attention):
    """x: any shape (B, ...); flattened to (B, input_dim) like x.view(B, -1)."""
    B = x.shape[0]
    xf = x.reshape(B, -1).astype(jnp.bfloat16)        # x.view(x.size(0), -1)
    In = xf.shape[1]
    H = p['w1'].shape[1]
    C = p['class_num']
    Cpad = p['c_pad']

    if attention:
        args = (xf, p['w1'], p['b1'], p['wa'], p['ba'], p['w2'], p['b2'])
        kernel = _mlp_attn_kernel
        flops = 2 * B * In * H + 2 * B * H * H + 2 * B * H * Cpad
        transc = B * H
    else:
        args = (xf, p['w1'], p['b1'], p['w2'], p['b2'])
        kernel = _mlp_plain_kernel
        flops = 2 * B * In * H + 2 * B * H * Cpad
        transc = 0

    bytes_accessed = sum(a.size * a.dtype.itemsize for a in args) + B * Cpad * 4

    out_pad = pl.pallas_call(
        kernel,
        out_shape=jax.ShapeDtypeStruct((B, Cpad), jnp.float32),
        grid=(1,),
        in_specs=[_full_spec(a.shape) for a in args],
        out_specs=_full_spec((B, Cpad)),
        cost_estimate=pl.CostEstimate(flops=flops, transcendentals=transc,
                                      bytes_accessed=bytes_accessed),
    )(*args)
    return out_pad[:, :C]                              # drop lane padding


# ---------------------------------------------------------------------------
# Pure-JAX references (for correctness checks)
# ---------------------------------------------------------------------------
def mlp_ref_f32(x, torch_params, attention):
    """Full-f32 reference with PyTorch-layout weights (module semantics)."""
    B = x.shape[0]
    xf = x.reshape(B, -1).astype(jnp.float32)
    h = jax.nn.relu(xf @ torch_params['w1'].T + torch_params['b1'])
    if attention:
        h = jax.nn.softmax(h @ torch_params['wa'].T + torch_params['ba'], axis=0)
    return h @ torch_params['w2'].T + torch_params['b2']


def mlp_ref_bf16(x, p, attention):
    """Reference mirroring the kernel's bf16-weight / f32-accumulate numerics."""
    B = x.shape[0]
    xf = x.reshape(B, -1).astype(jnp.bfloat16)
    h = jnp.dot(xf, p['w1'], preferred_element_type=jnp.float32) + p['b1']
    h = jnp.maximum(h, 0.0)
    if attention:
        a = jnp.dot(h.astype(jnp.bfloat16), p['wa'],
                    preferred_element_type=jnp.float32) + p['ba']
        h = jax.nn.softmax(a, axis=0)
    out = jnp.dot(h.astype(jnp.bfloat16), p['w2'],
                  preferred_element_type=jnp.float32) + p['b2']
    return out[:, :p['class_num']]


# ---------------------------------------------------------------------------
if __name__ == "__main__":
    # Module hyper-parameters (small, consistent with the forward pass)
    B = 2
    x_shape = (B, 4, 16, 16)          # flattens to input_dim = 4*16*16 = 1024
    input_dim = 4 * 16 * 16
    hidden_dim = 128
    class_num = 4

    key = jax.random.PRNGKey(0)
    k = jax.random.split(key, 8)

    # PyTorch nn.Linear layout: (out_features, in_features), f32
    torch_params = {
        'w1': 0.05 * jax.random.normal(k[0], (hidden_dim, input_dim), jnp.float32),
        'b1': 0.05 * jax.random.normal(k[1], (hidden_dim,), jnp.float32),
        'wa': 0.05 * jax.random.normal(k[2], (hidden_dim, hidden_dim), jnp.float32),
        'ba': 0.05 * jax.random.normal(k[3], (hidden_dim,), jnp.float32),
        'w2': 0.05 * jax.random.normal(k[4], (class_num, hidden_dim), jnp.float32),
        'b2': 0.05 * jax.random.normal(k[5], (class_num,), jnp.float32),
    }
    x = jax.random.normal(k[6], x_shape, jnp.float32)

    # One-time conversion to MXU-native (in, out) bf16 layout (+ fc2 lane pad)
    params_attn = prep_params(torch_params, attention=True)
    params_plain = prep_params(torch_params, attention=False)

    # attention=True path
    out_attn = jax.block_until_ready(mlp_forward(x, params_attn, attention=True))
    ref_attn_bf = mlp_ref_bf16(x, params_attn, attention=True)
    ref_attn_f32 = mlp_ref_f32(x, torch_params, attention=True)

    # attention=False path
    out_plain = jax.block_until_ready(mlp_forward(x, params_plain, attention=False))
    ref_plain_bf = mlp_ref_bf16(x, params_plain, attention=False)
    ref_plain_f32 = mlp_ref_f32(x, torch_params, attention=False)

    assert out_attn.shape == (B, class_num)
    assert out_plain.shape == (B, class_num)
    # Kernel vs numerically-identical (bf16-weight) reference: tight tolerance
    assert bool(jnp.allclose(out_attn, ref_attn_bf, atol=2e-3, rtol=2e-3))
    assert bool(jnp.allclose(out_plain, ref_plain_bf, atol=2e-3, rtol=2e-3))
    # Kernel vs full-f32 PyTorch-semantics reference: bf16-weight quantization tol
    assert bool(jnp.allclose(out_attn, ref_attn_f32, atol=5e-2, rtol=5e-2))
    assert bool(jnp.allclose(out_plain, ref_plain_f32, atol=5e-2, rtol=5e-2))
    print("KERNEL_OK")
</pallas_src>

<mosaic_0001>
module attributes {stable_mosaic.version = 11 : i64} {
  func.func @_mlp_attn_kernel(%arg0: i32, %arg1: memref<2x1024xbf16, #tpu.memory_space<vmem>>, %arg2: memref<1024x128xbf16, #tpu.memory_space<vmem>>, %arg3: memref<1x128xf32, #tpu.memory_space<vmem>>, %arg4: memref<128x128xbf16, #tpu.memory_space<vmem>>, %arg5: memref<1x128xf32, #tpu.memory_space<vmem>>, %arg6: memref<128x128xbf16, #tpu.memory_space<vmem>>, %arg7: memref<1x128xf32, #tpu.memory_space<vmem>>, %arg8: memref<2x128xf32, #tpu.memory_space<vmem>>) attributes {dimension_semantics = [#tpu.dimension_semantics<arbitrary>], iteration_bounds = array<i64: 1>, scalar_prefetch = 0 : i64, scratch_operands = 0 : i64, tpu.core_type = #tpu.core_type<tc>, window_params = [{pipeline_mode = #tpu.pipeline_mode<synchronous>, transform_indices = @transform_0, window_bounds = array<i64: 2, 1024>}, {pipeline_mode = #tpu.pipeline_mode<synchronous>, transform_indices = @transform_1, window_bounds = array<i64: 1024, 128>}, {pipeline_mode = #tpu.pipeline_mode<synchronous>, transform_indices = @transform_2, window_bounds = array<i64: 1, 128>}, {pipeline_mode = #tpu.pipeline_mode<synchronous>, transform_indices = @transform_3, window_bounds = array<i64: 128, 128>}, {pipeline_mode = #tpu.pipeline_mode<synchronous>, transform_indices = @transform_4, window_bounds = array<i64: 1, 128>}, {pipeline_mode = #tpu.pipeline_mode<synchronous>, transform_indices = @transform_5, window_bounds = array<i64: 128, 128>}, {pipeline_mode = #tpu.pipeline_mode<synchronous>, transform_indices = @transform_6, window_bounds = array<i64: 1, 128>}, {pipeline_mode = #tpu.pipeline_mode<synchronous>, transform_indices = @transform_7, window_bounds = array<i64: 2, 128>}]} {
    %c0 = arith.constant 0 : index
    %c0_0 = arith.constant 0 : index
    %0 = vector.load %arg1[%c0, %c0_0] : memref<2x1024xbf16, #tpu.memory_space<vmem>>, vector<2x1024xbf16>
    %c0_1 = arith.constant 0 : index
    %c0_2 = arith.constant 0 : index
    %1 = vector.load %arg2[%c0_1, %c0_2] : memref<1024x128xbf16, #tpu.memory_space<vmem>>, vector<1024x128xbf16>
    %cst = arith.constant dense<0.000000e+00> : vector<2x128xf32>
    %2 = tpu.matmul %0, %1, %cst {dimension_numbers = #tpu.dot_dimension_numbers<[1], [0], [0], [1], [0, 0, 1, 1], [], []>} : vector<2x1024xbf16>, vector<1024x128xbf16>, vector<2x128xf32> -> vector<2x128xf32>
    %c0_3 = arith.constant 0 : index
    %c0_4 = arith.constant 0 : index
    %3 = vector.load %arg3[%c0_3, %c0_4] : memref<1x128xf32, #tpu.memory_space<vmem>>, vector<1x128xf32>
    %4 = vector.broadcast %3 : vector<1x128xf32> to vector<2x128xf32>
    %5 = arith.addf %2, %4 : vector<2x128xf32>
    %cst_5 = arith.constant 0.000000e+00 : f32
    %6 = vector.broadcast %cst_5 : f32 to vector<2x128xf32>
    %7 = arith.maximumf %5, %6 : vector<2x128xf32>
    %8 = arith.truncf %7 : vector<2x128xf32> to vector<2x128xbf16>
    %c0_6 = arith.constant 0 : index
    %c0_7 = arith.constant 0 : index
    %9 = vector.load %arg4[%c0_6, %c0_7] : memref<128x128xbf16, #tpu.memory_space<vmem>>, vector<128x128xbf16>
    %cst_8 = arith.constant dense<0.000000e+00> : vector<2x128xf32>
    %10 = tpu.matmul %8, %9, %cst_8 {dimension_numbers = #tpu.dot_dimension_numbers<[1], [0], [0], [1], [0, 0, 1, 1], [], []>} : vector<2x128xbf16>, vector<128x128xbf16>, vector<2x128xf32> -> vector<2x128xf32>
    %c0_9 = arith.constant 0 : index
    %c0_10 = arith.constant 0 : index
    %11 = vector.load %arg5[%c0_9, %c0_10] : memref<1x128xf32, #tpu.memory_space<vmem>>, vector<1x128xf32>
    %12 = vector.broadcast %11 : vector<1x128xf32> to vector<2x128xf32>
    %13 = arith.addf %10, %12 : vector<2x128xf32>
    %cst_11 = arith.constant dense<0xFF800000> : vector<128xf32>
    %14 = vector.multi_reduction <maximumf>, %13, %cst_11 [0] : vector<2x128xf32> to vector<128xf32>
    %15 = vector.shape_cast %14 : vector<128xf32> to vector<1x128xf32>
    %16 = vector.broadcast %15 : vector<1x128xf32> to vector<2x128xf32>
    %17 = arith.subf %13, %16 : vector<2x128xf32>
    %18 = math.exp %17 : vector<2x128xf32>
    %cst_12 = arith.constant dense<0.000000e+00> : vector<128xf32>
    %19 = vector.multi_reduction <add>, %18, %cst_12 [0] : vector<2x128xf32> to vector<128xf32>
    %20 = vector.shape_cast %19 : vector<128xf32> to vector<1x128xf32>
    %21 = vector.broadcast %20 : vector<1x128xf32> to vector<2x128xf32>
    %22 = arith.divf %18, %21 : vector<2x128xf32>
    %23 = arith.truncf %22 : vector<2x128xf32> to vector<2x128xbf16>
    %c0_13 = arith.constant 0 : index
    %c0_14 = arith.constant 0 : index
    %24 = vector.load %arg6[%c0_13, %c0_14] : memref<128x128xbf16, #tpu.memory_space<vmem>>, vector<128x128xbf16>
    %cst_15 = arith.constant dense<0.000000e+00> : vector<2x128xf32>
    %25 = tpu.matmul %23, %24, %cst_15 {dimension_numbers = #tpu.dot_dimension_numbers<[1], [0], [0], [1], [0, 0, 1, 1], [], []>} : vector<2x128xbf16>, vector<128x128xbf16>, vector<2x128xf32> -> vector<2x128xf32>
    %c0_16 = arith.constant 0 : index
    %c0_17 = arith.constant 0 : index
    %26 = vector.load %arg7[%c0_16, %c0_17] : memref<1x128xf32, #tpu.memory_space<vmem>>, vector<1x128xf32>
    %27 = vector.broadcast %26 : vector<1x128xf32> to vector<2x128xf32>
    %28 = arith.addf %25, %27 : vector<2x128xf32>
    %c0_18 = arith.constant 0 : index
    %c0_19 = arith.constant 0 : index
    %29 = vector.load %arg8[%c0_18, %c0_19] : memref<2x128xf32, #tpu.memory_space<vmem>>, vector<2x128xf32>
    tpu.vector_store %arg8[%c0_18, %c0_19], %28 {strides = array<i32>} : memref<2x128xf32, #tpu.memory_space<vmem>>, vector<2x128xf32>,
    return
  }
  func.func @transform_0(%arg0: i32) -> (i32, i32) {
    %c0_i32 = arith.constant 0 : i32
    %c0_i32_0 = arith.constant 0 : i32
    %c0_i32_1 = arith.constant 0 : i32
    return %c0_i32, %c0_i32_0 : i32, i32
  }
  func.func @transform_1(%arg0: i32) -> (i32, i32) {
    %c0_i32 = arith.constant 0 : i32
    %c0_i32_0 = arith.constant 0 : i32
    %c0_i32_1 = arith.constant 0 : i32
    return %c0_i32, %c0_i32_0 : i32, i32
  }
  func.func @transform_2(%arg0: i32) -> (i32, i32) {
    %c0_i32 = arith.constant 0 : i32
    %c0_i32_0 = arith.constant 0 : i32
    %c0_i32_1 = arith.constant 0 : i32
    return %c0_i32, %c0_i32_0 : i32, i32
  }
  func.func @transform_3(%arg0: i32) -> (i32, i32) {
    %c0_i32 = arith.constant 0 : i32
    %c0_i32_0 = arith.constant 0 : i32
    %c0_i32_1 = arith.constant 0 : i32
    return %c0_i32, %c0_i32_0 : i32, i32
  }
  func.func @transform_4(%arg0: i32) -> (i32, i32) {
    %c0_i32 = arith.constant 0 : i32
    %c0_i32_0 = arith.constant 0 : i32
    %c0_i32_1 = arith.constant 0 : i32
    return %c0_i32, %c0_i32_0 : i32, i32
  }
  func.func @transform_5(%arg0: i32) -> (i32, i32) {
    %c0_i32 = arith.constant 0 : i32
    %c0_i32_0 = arith.constant 0 : i32
    %c0_i32_1 = arith.constant 0 : i32
    return %c0_i32, %c0_i32_0 : i32, i32
  }
  func.func @transform_6(%arg0: i32) -> (i32, i32) {
    %c0_i32 = arith.constant 0 : i32
    %c0_i32_0 = arith.constant 0 : i32
    %c0_i32_1 = arith.constant 0 : i32
    return %c0_i32, %c0_i32_0 : i32, i32
  }
  func.func @transform_7(%arg0: i32) -> (i32, i32) {
    %c0_i32 = arith.constant 0 : i32
    %c0_i32_0 = arith.constant 0 : i32
    %c0_i32_1 = arith.constant 0 : i32
    return %c0_i32, %c0_i32_0 : i32, i32
  }
}

</mosaic_0001>

<llo_original>
// kernel: tpu_custom_call.1
$region0: #{tpu_custom_call.1}
  #allocation0 [shape = 'u32[]', space=smem, size = 0x4, offset = 0x4, fixed_abs, tag = 'smem constant byte address 0x4 - core index']
  #allocation1 [shape = 'u32[72,128]{1,0:T(1,128)}', space=vmem, size = 0x9000, scoped, tag = 'internal scratch']
  %s0 = inlined_call_operand.hbm [shape: bf16[2,1024], index: 0, kind: input, shape index: {}]
  %s1 = inlined_call_operand.hbm [shape: bf16[1024,128], index: 1, kind: input, shape index: {}]
  %s2 = inlined_call_operand.vmem [shape: f32[1,128], index: 2, kind: input, shape index: {}]
  %s3 = inlined_call_operand.hbm [shape: bf16[128,128], index: 3, kind: input, shape index: {}]
  %s4 = inlined_call_operand.vmem [shape: f32[1,128], index: 4, kind: input, shape index: {}]
  %s5 = inlined_call_operand.hbm [shape: bf16[128,128], index: 5, kind: input, shape index: {}]
  %s6 = inlined_call_operand.vmem [shape: f32[1,128], index: 6, kind: input, shape index: {}]
  %s7 = inlined_call_operand.hbm [shape: f32[2,128], index: 7, kind: output, shape index: {}]
  %s8 = sld [smem:[#allocation0]]
  $region54: #{tpu_custom_call.1} parent=0
    _
  %s10 = ssub.s32 1, %s8
  %s11 = scalar_select 0, %s10, %s8
  $region1: #{tpu_custom_call.1} parent=0
    #allocation2 [shape = 'u8[4096]{0}', space=vmem, size = 0x1000, scoped, tag = 'input window, operand 0, single buffered']
    #allocation3 [shape = 's32[1]{0}', space=sflag, size = 0x4, scoped, tag = 'scoped memory for tpu_custom_call.1']
    #allocation4 [shape = 's32[1]{0}', space=sflag, size = 0x4, scoped, tag = 'scoped memory for tpu_custom_call.1']
    #allocation5 [shape = 'u8[262144]{0}', space=vmem, size = 0x40000, scoped, tag = 'input window, operand 1, single buffered']
    #allocation6 [shape = 's32[1]{0}', space=sflag, size = 0x4, scoped, tag = 'scoped memory for tpu_custom_call.1']
    #allocation7 [shape = 'u8[32768]{0}', space=vmem, size = 0x8000, scoped, tag = 'input window, operand 3, single buffered']
    #allocation8 [shape = 'u8[32768]{0}', space=vmem, size = 0x8000, scoped, tag = 'input window, operand 5, single buffered']
    #allocation9 [shape = 's32[1]{0}', space=sflag, size = 0x4, scoped, tag = 'scoped memory for tpu_custom_call.1']
    #allocation10 [shape = 'u8[1024]{0}', space=vmem, size = 0x400, scoped, tag = 'output window, operand 0, single buffered']
    %12 = vsyncpa [#allocation3], 0
    %13 = vsyncpa [#allocation6], 0
    %14 = vsyncpa [#allocation9], 0
    %15 = vsyncpa [#allocation4], 0
    // Predicated region
    $region2: #{tpu_custom_call.1} parent=1 // pred_check
      _
    $region3: #{tpu_custom_call.1} parent=1 // pred_check_branch
      %17 = sbr.rel (0) target = $region5
    $region4: #{tpu_custom_call.1} parent=1 // pred_region
      %19 = vsyncadd [#allocation3], 0
      %s21 = sshll.u32 %s0, 4
      %s22 = int_to_ptr.hbm [resolvable:$true] %s21
      %s23 = sshll.u32 [#allocation2], 4
      %s24 = int_to_ptr.vmem [resolvable:$true] %s23
      %26 = dma.hbm_to_vmem [thread:$0]  %s22, 128, %s24, [#allocation3]
    $region5: #{tpu_custom_call.1} parent=1 // pred_fallthru
      _
    // Predicated region
    $region6: #{tpu_custom_call.1} parent=1 // pred_check
      _
    $region7: #{tpu_custom_call.1} parent=1 // pred_check_branch
      %28 = sbr.rel (0) target = $region9
    $region8: #{tpu_custom_call.1} parent=1 // pred_region
      %30 = vsyncadd [#allocation6], 0
      %s31 = sshll.u32 %s1, 4
      %s32 = int_to_ptr.hbm [resolvable:$true] %s31
      %s33 = sshll.u32 [#allocation5], 4
      %s34 = int_to_ptr.vmem [resolvable:$true] %s33
      %39 = dma.hbm_to_vmem [thread:$0]  %s32, 8192, %s34, [#allocation6], 64, 64, 4
    $region9: #{tpu_custom_call.1} parent=1 // pred_fallthru
      _
    // Predicated region
    $region10: #{tpu_custom_call.1} parent=1 // pred_check
      _
    $region11: #{tpu_custom_call.1} parent=1 // pred_check_branch
      %41 = sbr.rel (0) target = $region13
    $region12: #{tpu_custom_call.1} parent=1 // pred_region
      _
    $region13: #{tpu_custom_call.1} parent=1 // pred_fallthru
      _
    // Predicated region
    $region14: #{tpu_custom_call.1} parent=1 // pred_check
      _
    $region15: #{tpu_custom_call.1} parent=1 // pred_check_branch
      %43 = sbr.rel (0) target = $region17
    $region16: #{tpu_custom_call.1} parent=1 // pred_region
      %45 = vsyncadd [#allocation6], 0
      %s46 = sshll.u32 %s3, 4
      %s47 = int_to_ptr.hbm [resolvable:$true] %s46
      %s48 = sshll.u32 [#allocation7], 4
      %s49 = int_to_ptr.vmem [resolvable:$true] %s48
      %54 = dma.hbm_to_vmem [thread:$0]  %s47, 1024, %s49, [#allocation6], 64, 64, 4
    $region17: #{tpu_custom_call.1} parent=1 // pred_fallthru
      _
    // Predicated region
    $region18: #{tpu_custom_call.1} parent=1 // pred_check
      _
    $region19: #{tpu_custom_call.1} parent=1 // pred_check_branch
      %56 = sbr.rel (0) target = $region21
    $region20: #{tpu_custom_call.1} parent=1 // pred_region
      _
    $region21: #{tpu_custom_call.1} parent=1 // pred_fallthru
      _
    // Predicated region
    $region22: #{tpu_custom_call.1} parent=1 // pred_check
      _
    $region23: #{tpu_custom_call.1} parent=1 // pred_check_branch
      %58 = sbr.rel (0) target = $region25
    $region24: #{tpu_custom_call.1} parent=1 // pred_region
      %60 = vsyncadd [#allocation9], 0
      %s61 = sshll.u32 %s5, 4
      %s62 = int_to_ptr.hbm [resolvable:$true] %s61
      %s63 = sshll.u32 [#allocation8], 4
      %s64 = int_to_ptr.vmem [resolvable:$true] %s63
      %69 = dma.hbm_to_vmem [thread:$0]  %s62, 1024, %s64, [#allocation9], 64, 64, 4
    $region25: #{tpu_custom_call.1} parent=1 // pred_fallthru
      _
    // Predicated region
    $region26: #{tpu_custom_call.1} parent=1 // pred_check
      _
    $region27: #{tpu_custom_call.1} parent=1 // pred_check_branch
      %71 = sbr.rel (0) target = $region29
    $region28: #{tpu_custom_call.1} parent=1 // pred_region
      _
    $region29: #{tpu_custom_call.1} parent=1 // pred_fallthru
      _
    // Predicated region
    $region30: #{tpu_custom_call.1} parent=1 // pred_check
      _
    $region31: #{tpu_custom_call.1} parent=1 // pred_check_branch
      %73 = sbr.rel (0) target = $region33
    $region32: #{tpu_custom_call.1} parent=1 // pred_region
      %75 = dma.done [#allocation3], 128
    $region33: #{tpu_custom_call.1} parent=1 // pred_fallthru
      _
    // Predicated region
    $region34: #{tpu_custom_call.1} parent=1 // pred_check
      _
    $region35: #{tpu_custom_call.1} parent=1 // pred_check_branch
      %77 = sbr.rel (0) target = $region37
    $region36: #{tpu_custom_call.1} parent=1 // pred_region
      %79 = dma.done [#allocation6], 8192
    $region37: #{tpu_custom_call.1} parent=1 // pred_fallthru
      _
    // Predicated region
    $region38: #{tpu_custom_call.1} parent=1 // pred_check
      _
    $region39: #{tpu_custom_call.1} parent=1 // pred_check_branch
      %81 = sbr.rel (0) target = $region41
    $region40: #{tpu_custom_call.1} parent=1 // pred_region
      %83 = dma.done [#allocation6], 1024
    $region41: #{tpu_custom_call.1} parent=1 // pred_fallthru
      _
    // Predicated region
    $region42: #{tpu_custom_call.1} parent=1 // pred_check
      _
    $region43: #{tpu_custom_call.1} parent=1 // pred_check_branch
      %85 = sbr.rel (0) target = $region45
    $region44: #{tpu_custom_call.1} parent=1 // pred_region
      %87 = dma.done [#allocation9], 1024
    $region45: #{tpu_custom_call.1} parent=1 // pred_fallthru
      _
    %v88 = vld [vmem:[#allocation2] sm:$0xff]
    %v89 = vld [vmem:[#allocation5] sm:$0xf]
    %v90 = vld [vmem:[#allocation5 + $0x4] sm:$0xf]
    %v91 = vld [vmem:[#allocation5 + $0x8] sm:$0xf]
    %v92 = vld [vmem:[#allocation5 + $0xc] sm:$0xf]
    %v93 = vld [vmem:[#allocation5 + $0x10] sm:$0xf]
    %v94 = vld [vmem:[#allocation5 + $0x14] sm:$0xf]
    %v95 = vld [vmem:[#allocation5 + $0x18] sm:$0xf]
    %v96 = vld [vmem:[#allocation5 + $0x1c] sm:$0xf]
    %v97 = vld [vmem:[#allocation5 + $0x20] sm:$0xf]
    %v98 = vld [vmem:[#allocation5 + $0x24] sm:$0xf]
    %v99 = vld [vmem:[#allocation5 + $0x28] sm:$0xf]
    %v100 = vld [vmem:[#allocation5 + $0x2c] sm:$0xf]
    %v101 = vld [vmem:[#allocation5 + $0x30] sm:$0xf]
    %v102 = vld [vmem:[#allocation5 + $0x34] sm:$0xf]
    %v103 = vld [vmem:[#allocation5 + $0x38] sm:$0xf]
    %v104 = vld [vmem:[#allocation5 + $0x3c] sm:$0xf]
    %v105 = vld [vmem:[#allocation5 + $0x40] sm:$0xf]
    %v106 = vld [vmem:[#allocation5 + $0x44] sm:$0xf]
    %v107 = vld [vmem:[#allocation5 + $0x48] sm:$0xf]
    %v108 = vld [vmem:[#allocation5 + $0x4c] sm:$0xf]
    %v109 = vld [vmem:[#allocation5 + $0x50] sm:$0xf]
    %v110 = vld [vmem:[#allocation5 + $0x54] sm:$0xf]
    %v111 = vld [vmem:[#allocation5 + $0x58] sm:$0xf]
    %v112 = vld [vmem:[#allocation5 + $0x5c] sm:$0xf]
    %v113 = vld [vmem:[#allocation5 + $0x60] sm:$0xf]
    %v114 = vld [vmem:[#allocation5 + $0x64] sm:$0xf]
    %v115 = vld [vmem:[#allocation5 + $0x68] sm:$0xf]
    %v116 = vld [vmem:[#allocation5 + $0x6c] sm:$0xf]
    %v117 = vld [vmem:[#allocation5 + $0x70] sm:$0xf]
    %v118 = vld [vmem:[#allocation5 + $0x74] sm:$0xf]
    %v119 = vld [vmem:[#allocation5 + $0x78] sm:$0xf]
    %v120 = vld [vmem:[#allocation5 + $0x7c] sm:$0xf]
    %v121 = vld [vmem:[#allocation5 + $0x80] sm:$0xf]
    %v122 = vld [vmem:[#allocation5 + $0x84] sm:$0xf]
    %v123 = vld [vmem:[#allocation5 + $0x88] sm:$0xf]
    %v124 = vld [vmem:[#allocation5 + $0x8c] sm:$0xf]
    %v125 = vld [vmem:[#allocation5 + $0x90] sm:$0xf]
    %v126 = vld [vmem:[#allocation5 + $0x94] sm:$0xf]
    %v127 = vld [vmem:[#allocation5 + $0x98] sm:$0xf]
    %v128 = vld [vmem:[#allocation5 + $0x9c] sm:$0xf]
    %v129 = vld [vmem:[#allocation5 + $0xa0] sm:$0xf]
    %v130 = vld [vmem:[#allocation5 + $0xa4] sm:$0xf]
    %v131 = vld [vmem:[#allocation5 + $0xa8] sm:$0xf]
    %v132 = vld [vmem:[#allocation5 + $0xac] sm:$0xf]
    %v133 = vld [vmem:[#allocation5 + $0xb0] sm:$0xf]
    %v134 = vld [vmem:[#allocation5 + $0xb4] sm:$0xf]
    %v135 = vld [vmem:[#allocation5 + $0xb8] sm:$0xf]
    %v136 = vld [vmem:[#allocation5 + $0xbc] sm:$0xf]
    %v137 = vld [vmem:[#allocation5 + $0xc0] sm:$0xf]
    %v138 = vld [vmem:[#allocation5 + $0xc4] sm:$0xf]
    %v139 = vld [vmem:[#allocation5 + $0xc8] sm:$0xf]
    %v140 = vld [vmem:[#allocation5 + $0xcc] sm:$0xf]
    %v141 = vld [vmem:[#allocation5 + $0xd0] sm:$0xf]
    %v142 = vld [vmem:[#allocation5 + $0xd4] sm:$0xf]
    %v143 = vld [vmem:[#allocation5 + $0xd8] sm:$0xf]
    %v144 = vld [vmem:[#allocation5 + $0xdc] sm:$0xf]
    %v145 = vld [vmem:[#allocation5 + $0xe0] sm:$0xf]
    %v146 = vld [vmem:[#allocation5 + $0xe4] sm:$0xf]
    %v147 = vld [vmem:[#allocation5 + $0xe8] sm:$0xf]
    %v148 = vld [vmem:[#allocation5 + $0xec] sm:$0xf]
    %v149 = vld [vmem:[#allocation5 + $0xf0] sm:$0xf]
    %v150 = vld [vmem:[#allocation5 + $0xf4] sm:$0xf]
    %v151 = vld [vmem:[#allocation5 + $0xf8] sm:$0xf]
    %v152 = vld [vmem:[#allocation5 + $0xfc] sm:$0xf]
    %v153 = vld [vmem:[#allocation5 + $0x100] sm:$0xf]
    %v154 = vld [vmem:[#allocation5 + $0x104] sm:$0xf]
    %v155 = vld [vmem:[#allocation5 + $0x108] sm:$0xf]
    %v156 = vld [vmem:[#allocation5 + $0x10c] sm:$0xf]
    %v157 = vld [vmem:[#allocation5 + $0x110] sm:$0xf]
    %v158 = vld [vmem:[#allocation5 + $0x114] sm:$0xf]
    %v159 = vld [vmem:[#allocation5 + $0x118] sm:$0xf]
    %v160 = vld [vmem:[#allocation5 + $0x11c] sm:$0xf]
    %v161 = vld [vmem:[#allocation5 + $0x120] sm:$0xf]
    %v162 = vld [vmem:[#allocation5 + $0x124] sm:$0xf]
    %v163 = vld [vmem:[#allocation5 + $0x128] sm:$0xf]
    %v164 = vld [vmem:[#allocation5 + $0x12c] sm:$0xf]
    %v165 = vld [vmem:[#allocation5 + $0x130] sm:$0xf]
    %v166 = vld [vmem:[#allocation5 + $0x134] sm:$0xf]
    %v167 = vld [vmem:[#allocation5 + $0x138] sm:$0xf]
    %v168 = vld [vmem:[#allocation5 + $0x13c] sm:$0xf]
    %v169 = vld [vmem:[#allocation5 + $0x140] sm:$0xf]
    %v170 = vld [vmem:[#allocation5 + $0x144] sm:$0xf]
    %v171 = vld [vmem:[#allocation5 + $0x148] sm:$0xf]
    %v172 = vld [vmem:[#allocation5 + $0x14c] sm:$0xf]
    %v173 = vld [vmem:[#allocation5 + $0x150] sm:$0xf]
    %v174 = vld [vmem:[#allocation5 + $0x154] sm:$0xf]
    %v175 = vld [vmem:[#allocation5 + $0x158] sm:$0xf]
    %v176 = vld [vmem:[#allocation5 + $0x15c] sm:$0xf]
    %v177 = vld [vmem:[#allocation5 + $0x160] sm:$0xf]
    %v178 = vld [vmem:[#allocation5 + $0x164] sm:$0xf]
    %v179 = vld [vmem:[#allocation5 + $0x168] sm:$0xf]
    %v180 = vld [vmem:[#allocation5 + $0x16c] sm:$0xf]
    %v181 = vld [vmem:[#allocation5 + $0x170] sm:$0xf]
    %v182 = vld [vmem:[#allocation5 + $0x174] sm:$0xf]
    %v183 = vld [vmem:[#allocation5 + $0x178] sm:$0xf]
    %v184 = vld [vmem:[#allocation5 + $0x17c] sm:$0xf]
    %v185 = vld [vmem:[#allocation5 + $0x180] sm:$0xf]
    %v186 = vld [vmem:[#allocation5 + $0x184] sm:$0xf]
    %v187 = vld [vmem:[#allocation5 + $0x188] sm:$0xf]
    %v188 = vld [vmem:[#allocation5 + $0x18c] sm:$0xf]
    %v189 = vld [vmem:[#allocation5 + $0x190] sm:$0xf]
    %v190 = vld [vmem:[#allocation5 + $0x194] sm:$0xf]
    %v191 = vld [vmem:[#allocation5 + $0x198] sm:$0xf]
    %v192 = vld [vmem:[#allocation5 + $0x19c] sm:$0xf]
    %v193 = vld [vmem:[#allocation5 + $0x1a0] sm:$0xf]
    %v194 = vld [vmem:[#allocation5 + $0x1a4] sm:$0xf]
    %v195 = vld [vmem:[#allocation5 + $0x1a8] sm:$0xf]
    %v196 = vld [vmem:[#allocation5 + $0x1ac] sm:$0xf]
    %v197 = vld [vmem:[#allocation5 + $0x1b0] sm:$0xf]
    %v198 = vld [vmem:[#allocation5 + $0x1b4] sm:$0xf]
    %v199 = vld [vmem:[#allocation5 + $0x1b8] sm:$0xf]
    %v200 = vld [vmem:[#allocation5 + $0x1bc] sm:$0xf]
    %v201 = vld [vmem:[#allocation5 + $0x1c0] sm:$0xf]
    %v202 = vld [vmem:[#allocation5 + $0x1c4] sm:$0xf]
    %v203 = vld [vmem:[#allocation5 + $0x1c8] sm:$0xf]
    %v204 = vld [vmem:[#allocation5 + $0x1cc] sm:$0xf]
    %v205 = vld [vmem:[#allocation5 + $0x1d0] sm:$0xf]
    %v206 = vld [vmem:[#allocation5 + $0x1d4] sm:$0xf]
    %v207 = vld [vmem:[#allocation5 + $0x1d8] sm:$0xf]
    %v208 = vld [vmem:[#allocation5 + $0x1dc] sm:$0xf]
    %v209 = vld [vmem:[#allocation5 + $0x1e0] sm:$0xf]
    %v210 = vld [vmem:[#allocation5 + $0x1e4] sm:$0xf]
    %v211 = vld [vmem:[#allocation5 + $0x1e8] sm:$0xf]
    %v212 = vld [vmem:[#allocation5 + $0x1ec] sm:$0xf]
    %v213 = vld [vmem:[#allocation5 + $0x1f0] sm:$0xf]
    %v214 = vld [vmem:[#allocation5 + $0x1f4] sm:$0xf]
    %v215 = vld [vmem:[#allocation5 + $0x1f8] sm:$0xf]
    %v216 = vld [vmem:[#allocation5 + $0x1fc] sm:$0xf]
    %v217 = vld [vmem:[%s2] sm:$0x1]
    %v219 = vperm.slane %v217, 0
    %222 = vst [vmem:[#allocation1] ss:$9 sm:$0xff] %v88
    %v223 = vld [vmem:[#allocation1] sm:$0xff]
    %v224 = vld [vmem:[#allocation1 + $0x9] sm:$0xff]
    %v225 = vld [vmem:[#allocation1 + $0x12] sm:$0xff]
    %v226 = vld [vmem:[#allocation1 + $0x1b] sm:$0xff]
    %v227 = vld [vmem:[#allocation1 + $0x24] sm:$0xff]
    %v228 = vld [vmem:[#allocation1 + $0x2d] sm:$0xff]
    %v229 = vld [vmem:[#allocation1 + $0x36] sm:$0xff]
    %v230 = vld [vmem:[#allocation1 + $0x3f] sm:$0xff]
    %v367 = vunpack.c.l.b16 %v89
    %v368 = vunpack.c.l.b16 %v90
    %v369 = vunpack.c.l.b16 %v91
    %v370 = vunpack.c.l.b16 %v92
    %v371 = vunpack.c.l.b16 %v93
    %v372 = vunpack.c.l.b16 %v94
    %v373 = vunpack.c.l.b16 %v95
    %v374 = vunpack.c.l.b16 %v96
    %v375 = vunpack.c.l.b16 %v97
    %v376 = vunpack.c.l.b16 %v98
    %v377 = vunpack.c.l.b16 %v99
    %v378 = vunpack.c.l.b16 %v100
    %v379 = vunpack.c.l.b16 %v101
    %v380 = vunpack.c.l.b16 %v102
    %v381 = vunpack.c.l.b16 %v103
    %v382 = vunpack.c.l.b16 %v104
    %v383 = vunpack.c.l.b16 %v105
    %v384 = vunpack.c.l.b16 %v106
    %v385 = vunpack.c.l.b16 %v107
    %v386 = vunpack.c.l.b16 %v108
    %v387 = vunpack.c.l.b16 %v109
    %v388 = vunpack.c.l.b16 %v110
    %v389 = vunpack.c.l.b16 %v111
    %v390 = vunpack.c.l.b16 %v112
    %v391 = vunpack.c.l.b16 %v113
    %v392 = vunpack.c.l.b16 %v114
    %v393 = vunpack.c.l.b16 %v115
    %v394 = vunpack.c.l.b16 %v116
    %v395 = vunpack.c.l.b16 %v117
    %v396 = vunpack.c.l.b16 %v118
    %v397 = vunpack.c.l.b16 %v119
    %v398 = vunpack.c.l.b16 %v120
    %v399 = vunpack.c.l.b16 %v121
    %v400 = vunpack.c.l.b16 %v122
    %v401 = vunpack.c.l.b16 %v123
    %v402 = vunpack.c.l.b16 %v124
    %v403 = vunpack.c.l.b16 %v125
    %v404 = vunpack.c.l.b16 %v126
    %v405 = vunpack.c.l.b16 %v127
    %v406 = vunpack.c.l.b16 %v128
    %v407 = vunpack.c.l.b16 %v129
    %v408 = vunpack.c.l.b16 %v130
    %v409 = vunpack.c.l.b16 %v131
    %v410 = vunpack.c.l.b16 %v132
    %v411 = vunpack.c.l.b16 %v133
    %v412 = vunpack.c.l.b16 %v134
    %v413 = vunpack.c.l.b16 %v135
    %v414 = vunpack.c.l.b16 %v136
    %v415 = vunpack.c.l.b16 %v137
    %v416 = vunpack.c.l.b16 %v138
    %v417 = vunpack.c.l.b16 %v139
    %v418 = vunpack.c.l.b16 %v140
    %v419 = vunpack.c.l.b16 %v141
    %v420 = vunpack.c.l.b16 %v142
    %v421 = vunpack.c.l.b16 %v143
    %v422 = vunpack.c.l.b16 %v144
    %v423 = vunpack.c.l.b16 %v145
    %v424 = vunpack.c.l.b16 %v146
    %v425 = vunpack.c.l.b16 %v147
    %v426 = vunpack.c.l.b16 %v148
    %v427 = vunpack.c.l.b16 %v149
    %v428 = vunpack.c.l.b16 %v150
    %v429 = vunpack.c.l.b16 %v151
    %v430 = vunpack.c.l.b16 %v152
    %v431 = vunpack.c.l.b16 %v153
    %v432 = vunpack.c.l.b16 %v154
    %v433 = vunpack.c.l.b16 %v155
    %v434 = vunpack.c.l.b16 %v156
    %v435 = vunpack.c.l.b16 %v157
    %v436 = vunpack.c.l.b16 %v158
    %v437 = vunpack.c.l.b16 %v159
    %v438 = vunpack.c.l.b16 %v160
    %v439 = vunpack.c.l.b16 %v161
    %v440 = vunpack.c.l.b16 %v162
    %v441 = vunpack.c.l.b16 %v163
    %v442 = vunpack.c.l.b16 %v164
    %v443 = vunpack.c.l.b16 %v165
    %v444 = vunpack.c.l.b16 %v166
    %v445 = vunpack.c.l.b16 %v167
    %v446 = vunpack.c.l.b16 %v168
    %v447 = vunpack.c.l.b16 %v169
    %v448 = vunpack.c.l.b16 %v170
    %v449 = vunpack.c.l.b16 %v171
    %v450 = vunpack.c.l.b16 %v172
    %v451 = vunpack.c.l.b16 %v173
    %v452 = vunpack.c.l.b16 %v174
    %v453 = vunpack.c.l.b16 %v175
    %v454 = vunpack.c.l.b16 %v176
    %v455 = vunpack.c.l.b16 %v177
    %v456 = vunpack.c.l.b16 %v178
    %v457 = vunpack.c.l.b16 %v179
    %v458 = vunpack.c.l.b16 %v180
    %v459 = vunpack.c.l.b16 %v181
    %v460 = vunpack.c.l.b16 %v182
    %v461 = vunpack.c.l.b16 %v183
    %v462 = vunpack.c.l.b16 %v184
    %v463 = vunpack.c.l.b16 %v185
    %v464 = vunpack.c.l.b16 %v186
    %v465 = vunpack.c.l.b16 %v187
    %v466 = vunpack.c.l.b16 %v188
    %v467 = vunpack.c.l.b16 %v189
    %v468 = vunpack.c.l.b16 %v190
    %v469 = vunpack.c.l.b16 %v191
    %v470 = vunpack.c.l.b16 %v192
    %v471 = vunpack.c.l.b16 %v193
    %v472 = vunpack.c.l.b16 %v194
    %v473 = vunpack.c.l.b16 %v195
    %v474 = vunpack.c.l.b16 %v196
    %v475 = vunpack.c.l.b16 %v197
    %v476 = vunpack.c.l.b16 %v198
    %v477 = vunpack.c.l.b16 %v199
    %v478 = vunpack.c.l.b16 %v200
    %v479 = vunpack.c.l.b16 %v201
    %v480 = vunpack.c.l.b16 %v202
    %v481 = vunpack.c.l.b16 %v203
    %v482 = vunpack.c.l.b16 %v204
    %v483 = vunpack.c.l.b16 %v205
    %v484 = vunpack.c.l.b16 %v206
    %v485 = vunpack.c.l.b16 %v207
    %v486 = vunpack.c.l.b16 %v208
    %v487 = vunpack.c.l.b16 %v209
    %v488 = vunpack.c.l.b16 %v210
    %v489 = vunpack.c.l.b16 %v211
    %v490 = vunpack.c.l.b16 %v212
    %v491 = vunpack.c.l.b16 %v213
    %v492 = vunpack.c.l.b16 %v214
    %v493 = vunpack.c.l.b16 %v215
    %v494 = vunpack.c.l.b16 %v216
    %v495 = vpack.c.b16 %v368, %v367
    %v496 = vpack.c.b16 %v370, %v369
    %v497 = vpack.c.b16 %v372, %v371
    %v498 = vpack.c.b16 %v374, %v373
    %v499 = vpack.c.b16 %v376, %v375
    %v500 = vpack.c.b16 %v378, %v377
    %v501 = vpack.c.b16 %v380, %v379
    %v502 = vpack.c.b16 %v382, %v381
    %v503 = vpack.c.b16 %v384, %v383
    %v504 = vpack.c.b16 %v386, %v385
    %v505 = vpack.c.b16 %v388, %v387
    %v506 = vpack.c.b16 %v390, %v389
    %v507 = vpack.c.b16 %v392, %v391
    %v508 = vpack.c.b16 %v394, %v393
    %v509 = vpack.c.b16 %v396, %v395
    %v510 = vpack.c.b16 %v398, %v397
    %v511 = vpack.c.b16 %v400, %v399
    %v512 = vpack.c.b16 %v402, %v401
    %v513 = vpack.c.b16 %v404, %v403
    %v514 = vpack.c.b16 %v406, %v405
    %v515 = vpack.c.b16 %v408, %v407
    %v516 = vpack.c.b16 %v410, %v409
    %v517 = vpack.c.b16 %v412, %v411
    %v518 = vpack.c.b16 %v414, %v413
    %v519 = vpack.c.b16 %v416, %v415
    %v520 = vpack.c.b16 %v418, %v417
    %v521 = vpack.c.b16 %v420, %v419
    %v522 = vpack.c.b16 %v422, %v421
    %v523 = vpack.c.b16 %v424, %v423
    %v524 = vpack.c.b16 %v426, %v425
    %v525 = vpack.c.b16 %v428, %v427
    %v526 = vpack.c.b16 %v430, %v429
    %v527 = vpack.c.b16 %v432, %v431
    %v528 = vpack.c.b16 %v434, %v433
    %v529 = vpack.c.b16 %v436, %v435
    %v530 = vpack.c.b16 %v438, %v437
    %v531 = vpack.c.b16 %v440, %v439
    %v532 = vpack.c.b16 %v442, %v441
    %v533 = vpack.c.b16 %v444, %v443
    %v534 = vpack.c.b16 %v446, %v445
    %v535 = vpack.c.b16 %v448, %v447
    %v536 = vpack.c.b16 %v450, %v449
    %v537 = vpack.c.b16 %v452, %v451
    %v538 = vpack.c.b16 %v454, %v453
    %v539 = vpack.c.b16 %v456, %v455
    %v540 = vpack.c.b16 %v458, %v457
    %v541 = vpack.c.b16 %v460, %v459
    %v542 = vpack.c.b16 %v462, %v461
    %v543 = vpack.c.b16 %v464, %v463
    %v544 = vpack.c.b16 %v466, %v465
    %v545 = vpack.c.b16 %v468, %v467
    %v546 = vpack.c.b16 %v470, %v469
    %v547 = vpack.c.b16 %v472, %v471
    %v548 = vpack.c.b16 %v474, %v473
    %v549 = vpack.c.b16 %v476, %v475
    %v550 = vpack.c.b16 %v478, %v477
    %v551 = vpack.c.b16 %v480, %v479
    %v552 = vpack.c.b16 %v482, %v481
    %v553 = vpack.c.b16 %v484, %v483
    %v554 = vpack.c.b16 %v486, %v485
    %v555 = vpack.c.b16 %v488, %v487
    %v556 = vpack.c.b16 %v490, %v489
    %v557 = vpack.c.b16 %v492, %v491
    %v558 = vpack.c.b16 %v494, %v493
    %623 = vmatpush.bf16.msra.mxu0 %v502
    %624 = vmatpush.bf16.msra.mxu0 %v501
    %625 = vmatpush.bf16.msra.mxu0 %v500
    %626 = vmatpush.bf16.msra.mxu0 %v499
    %627 = vmatpush.bf16.msra.mxu0 %v498
    %628 = vmatpush.bf16.msra.mxu0 %v497
    %629 = vmatpush.bf16.msra.mxu0 %v496
    %630 = vmatpush.bf16.msra.mxu0 %v495
    %631 = vmatmul.bf16.gmra.mxu0 %v223
    %v632 = vpop.f32.mrf.mxu0
    %v633 = vadd.f32 %v219, %v632
    %v634 = vpop.f32.mrf.mxu0
    %635 = vdwg.mxu0
    %636 = vmatpush.bf16.msra.mxu0 %v510
    %637 = vmatpush.bf16.msra.mxu0 %v509
    %638 = vmatpush.bf16.msra.mxu0 %v508
    %639 = vmatpush.bf16.msra.mxu0 %v507
    %640 = vmatpush.bf16.msra.mxu0 %v506
    %641 = vmatpush.bf16.msra.mxu0 %v505
    %642 = vmatpush.bf16.msra.mxu0 %v504
    %643 = vmatpush.bf16.msra.mxu0 %v503
    %644 = vmatmul.bf16.gmra.mxu0 %v224
    %v645 = vpop.f32.mrf.mxu0
    %v646 = vadd.f32 %v633, %v645
    %v647 = vpop.f32.mrf.mxu0
    %648 = vdwg.mxu0
    %649 = vmatpush.bf16.msra.mxu0 %v518
    %650 = vmatpush.bf16.msra.mxu0 %v517
    %651 = vmatpush.bf16.msra.mxu0 %v516
    %652 = vmatpush.bf16.msra.mxu0 %v515
    %653 = vmatpush.bf16.msra.mxu0 %v514
    %654 = vmatpush.bf16.msra.mxu0 %v513
    %655 = vmatpush.bf16.msra.mxu0 %v512
    %656 = vmatpush.bf16.msra.mxu0 %v511
    %657 = vmatmul.bf16.gmra.mxu0 %v225
    %v658 = vpop.f32.mrf.mxu0
    %v659 = vadd.f32 %v646, %v658
    %v660 = vpop.f32.mrf.mxu0
    %661 = vdwg.mxu0
    %662 = vmatpush.bf16.msra.mxu0 %v526
    %663 = vmatpush.bf16.msra.mxu0 %v525
    %664 = vmatpush.bf16.msra.mxu0 %v524
    %665 = vmatpush.bf16.msra.mxu0 %v523
    %666 = vmatpush.bf16.msra.mxu0 %v522
    %667 = vmatpush.bf16.msra.mxu0 %v521
    %668 = vmatpush.bf16.msra.mxu0 %v520
    %669 = vmatpush.bf16.msra.mxu0 %v519
    %670 = vmatmul.bf16.gmra.mxu0 %v226
    %v671 = vpop.f32.mrf.mxu0
    %v672 = vadd.f32 %v659, %v671
    %v673 = vpop.f32.mrf.mxu0
    %674 = vdwg.mxu0
    %675 = vmatpush.bf16.msra.mxu0 %v534
    %676 = vmatpush.bf16.msra.mxu0 %v533
    %677 = vmatpush.bf16.msra.mxu0 %v532
    %678 = vmatpush.bf16.msra.mxu0 %v531
    %679 = vmatpush.bf16.msra.mxu0 %v530
    %680 = vmatpush.bf16.msra.mxu0 %v529
    %681 = vmatpush.bf16.msra.mxu0 %v528
    %682 = vmatpush.bf16.msra.mxu0 %v527
    %683 = vmatmul.bf16.gmra.mxu0 %v227
    %v684 = vpop.f32.mrf.mxu0
    %v685 = vadd.f32 %v672, %v684
    %v686 = vpop.f32.mrf.mxu0
    %687 = vdwg.mxu0
    %688 = vmatpush.bf16.msra.mxu0 %v542
    %689 = vmatpush.bf16.msra.mxu0 %v541
    %690 = vmatpush.bf16.msra.mxu0 %v540
    %691 = vmatpush.bf16.msra.mxu0 %v539
    %692 = vmatpush.bf16.msra.mxu0 %v538
    %693 = vmatpush.bf16.msra.mxu0 %v537
    %694 = vmatpush.bf16.msra.mxu0 %v536
    %695 = vmatpush.bf16.msra.mxu0 %v535
    %696 = vmatmul.bf16.gmra.mxu0 %v228
    %v697 = vpop.f32.mrf.mxu0
    %v698 = vadd.f32 %v685, %v697
    %v699 = vpop.f32.mrf.mxu0
    %700 = vdwg.mxu0
    %701 = vmatpush.bf16.msra.mxu0 %v550
    %702 = vmatpush.bf16.msra.mxu0 %v549
    %703 = vmatpush.bf16.msra.mxu0 %v548
    %704 = vmatpush.bf16.msra.mxu0 %v547
    %705 = vmatpush.bf16.msra.mxu0 %v546
    %706 = vmatpush.bf16.msra.mxu0 %v545
    %707 = vmatpush.bf16.msra.mxu0 %v544
    %708 = vmatpush.bf16.msra.mxu0 %v543
    %709 = vmatmul.bf16.gmra.mxu0 %v229
    %v710 = vpop.f32.mrf.mxu0
    %v711 = vadd.f32 %v698, %v710
    %v712 = vpop.f32.mrf.mxu0
    %713 = vdwg.mxu0
    %714 = vmatpush.bf16.msra.mxu0 %v558
    %715 = vmatpush.bf16.msra.mxu0 %v557
    %716 = vmatpush.bf16.msra.mxu0 %v556
    %717 = vmatpush.bf16.msra.mxu0 %v555
    %718 = vmatpush.bf16.msra.mxu0 %v554
    %719 = vmatpush.bf16.msra.mxu0 %v553
    %720 = vmatpush.bf16.msra.mxu0 %v552
    %721 = vmatpush.bf16.msra.mxu0 %v551
    %722 = vmatmul.bf16.gmra.mxu0 %v230
    %v723 = vpop.f32.mrf.mxu0
    %v724 = vadd.f32 %v711, %v723
    %v725 = vpop.f32.mrf.mxu0
    %726 = vdwg.mxu0
    %v727 = vmax.f32 %v724, 0.0
    %v728 = vpack.c.bf16 %v727, %v727
    %v729 = vld [vmem:[#allocation7] sm:$0xf]
    %v730 = vld [vmem:[#allocation7 + $0x4] sm:$0xf]
    %v731 = vld [vmem:[#allocation7 + $0x8] sm:$0xf]
    %v732 = vld [vmem:[#allocation7 + $0xc] sm:$0xf]
    %v733 = vld [vmem:[#allocation7 + $0x10] sm:$0xf]
    %v734 = vld [vmem:[#allocation7 + $0x14] sm:$0xf]
    %v735 = vld [vmem:[#allocation7 + $0x18] sm:$0xf]
    %v736 = vld [vmem:[#allocation7 + $0x1c] sm:$0xf]
    %v737 = vld [vmem:[#allocation7 + $0x20] sm:$0xf]
    %v738 = vld [vmem:[#allocation7 + $0x24] sm:$0xf]
    %v739 = vld [vmem:[#allocation7 + $0x28] sm:$0xf]
    %v740 = vld [vmem:[#allocation7 + $0x2c] sm:$0xf]
    %v741 = vld [vmem:[#allocation7 + $0x30] sm:$0xf]
    %v742 = vld [vmem:[#allocation7 + $0x34] sm:$0xf]
    %v743 = vld [vmem:[#allocation7 + $0x38] sm:$0xf]
    %v744 = vld [vmem:[#allocation7 + $0x3c] sm:$0xf]
    %v745 = vld [vmem:[%s4] sm:$0x1]
    %v747 = vperm.slane %v745, 0
    %v765 = vunpack.c.l.b16 %v729
    %v766 = vunpack.c.l.b16 %v730
    %v767 = vunpack.c.l.b16 %v731
    %v768 = vunpack.c.l.b16 %v732
    %v769 = vunpack.c.l.b16 %v733
    %v770 = vunpack.c.l.b16 %v734
    %v771 = vunpack.c.l.b16 %v735
    %v772 = vunpack.c.l.b16 %v736
    %v773 = vunpack.c.l.b16 %v737
    %v774 = vunpack.c.l.b16 %v738
    %v775 = vunpack.c.l.b16 %v739
    %v776 = vunpack.c.l.b16 %v740
    %v777 = vunpack.c.l.b16 %v741
    %v778 = vunpack.c.l.b16 %v742
    %v779 = vunpack.c.l.b16 %v743
    %v780 = vunpack.c.l.b16 %v744
    %v781 = vpack.c.b16 %v766, %v765
    %v782 = vpack.c.b16 %v768, %v767
    %v783 = vpack.c.b16 %v770, %v769
    %v784 = vpack.c.b16 %v772, %v771
    %v785 = vpack.c.b16 %v774, %v773
    %v786 = vpack.c.b16 %v776, %v775
    %v787 = vpack.c.b16 %v778, %v777
    %v788 = vpack.c.b16 %v780, %v779
    %797 = vmatpush.bf16.msra.mxu0 %v788
    %798 = vmatpush.bf16.msra.mxu0 %v787
    %799 = vmatpush.bf16.msra.mxu0 %v786
    %800 = vmatpush.bf16.msra.mxu0 %v785
    %801 = vmatpush.bf16.msra.mxu0 %v784
    %802 = vmatpush.bf16.msra.mxu0 %v783
    %803 = vmatpush.bf16.msra.mxu0 %v782
    %804 = vmatpush.bf16.msra.mxu0 %v781
    %805 = vmatmul.bf16.gmra.mxu0 %v728
    %v806 = vpop.f32.mrf.mxu0
    %v807 = vadd.f32 %v747, %v806
    %v808 = vpop.f32.mrf.mxu0
    %809 = vdwg.mxu0
    %vm810 = vcmask 1041408
    %v811 = vsel %vm810, %v807, -inf
    %v812 = vrot.slane %v811, 4
    %v813 = vmax.f32 %v811, %v812
    %v814 = vrot.slane %v813, 2
    %v815 = vmax.f32 %v813, %v814
    %v816 = vrot.slane %v815, 1
    %v817 = vmax.f32 %v815, %v816
    %v818 = vsub.f32 %v807, %v817
    %v819 = vmul.f32 %v818, 1.442695
    %v820 = vpow.pop %v819
    %v821 = vsel %vm810, %v820, 0.0
    %v822 = vrot.slane %v821, 4
    %v823 = vadd.f32 %v821, %v822
    %v824 = vrot.slane %v823, 2
    %v825 = vadd.f32 %v823, %v824
    %v826 = vrot.slane %v825, 1
    %v827 = vadd.f32 %v825, %v826
    %v828 = vrcp.pop %v827
    %v829 = vmul.f32 %v827, %v828
    %v830 = vsub.f32 1.0, %v829
    %v831 = vmul.f32 %v828, %v830
    %v832 = vadd.f32 %v828, %v831
    %vm833 = vweird.f32 %v827
    %vm834 = vweird.f32 %v828
    %vm835 = vmor %vm833, %vm834
    %v836 = vsel %vm835, %v828, %v832
    %v837 = vand.u32 2147483647, %v827
    %vm838 = vcmp.eq.f32.partialorder %v837, 8.507059e+37
    %v839 = vand.u32 %v827, 2147483648
    %v840 = vor.u32 1.1754944e-38, %v839
    %v841 = vsel %vm838, %v840, %v836
    %v842 = vmul.f32 %v820, %v841
    %v843 = vpack.c.bf16 %v842, %v842
    %v844 = vld [vmem:[#allocation8] sm:$0xf]
    %v845 = vld [vmem:[#allocation8 + $0x4] sm:$0xf]
    %v846 = vld [vmem:[#allocation8 + $0x8] sm:$0xf]
    %v847 = vld [vmem:[#allocation8 + $0xc] sm:$0xf]
    %v848 = vld [vmem:[#allocation8 + $0x10] sm:$0xf]
    %v849 = vld [vmem:[#allocation8 + $0x14] sm:$0xf]
    %v850 = vld [vmem:[#allocation8 + $0x18] sm:$0xf]
    %v851 = vld [vmem:[#allocation8 + $0x1c] sm:$0xf]
    %v852 = vld [vmem:[#allocation8 + $0x20] sm:$0xf]
    %v853 = vld [vmem:[#allocation8 + $0x24] sm:$0xf]
    %v854 = vld [vmem:[#allocation8 + $0x28] sm:$0xf]
    %v855 = vld [vmem:[#allocation8 + $0x2c] sm:$0xf]
    %v856 = vld [vmem:[#allocation8 + $0x30] sm:$0xf]
    %v857 = vld [vmem:[#allocation8 + $0x34] sm:$0xf]
    %v858 = vld [vmem:[#allocation8 + $0x38] sm:$0xf]
    %v859 = vld [vmem:[#allocation8 + $0x3c] sm:$0xf]
    %v860 = vld [vmem:[%s6] sm:$0x1]
    %v862 = vperm.slane %v860, 0
    %v880 = vunpack.c.l.b16 %v844
    %v881 = vunpack.c.l.b16 %v845
    %v882 = vunpack.c.l.b16 %v846
    %v883 = vunpack.c.l.b16 %v847
    %v884 = vunpack.c.l.b16 %v848
    %v885 = vunpack.c.l.b16 %v849
    %v886 = vunpack.c.l.b16 %v850
    %v887 = vunpack.c.l.b16 %v851
    %v888 = vunpack.c.l.b16 %v852
    %v889 = vunpack.c.l.b16 %v853
    %v890 = vunpack.c.l.b16 %v854
    %v891 = vunpack.c.l.b16 %v855
    %v892 = vunpack.c.l.b16 %v856
    %v893 = vunpack.c.l.b16 %v857
    %v894 = vunpack.c.l.b16 %v858
    %v895 = vunpack.c.l.b16 %v859
    %v896 = vpack.c.b16 %v881, %v880
    %v897 = vpack.c.b16 %v883, %v882
    %v898 = vpack.c.b16 %v885, %v884
    %v899 = vpack.c.b16 %v887, %v886
    %v900 = vpack.c.b16 %v889, %v888
    %v901 = vpack.c.b16 %v891, %v890
    %v902 = vpack.c.b16 %v893, %v892
    %v903 = vpack.c.b16 %v895, %v894
    %912 = vmatpush.bf16.msra.mxu0 %v903
    %913 = vmatpush.bf16.msra.mxu0 %v902
    %914 = vmatpush.bf16.msra.mxu0 %v901
    %915 = vmatpush.bf16.msra.mxu0 %v900
    %916 = vmatpush.bf16.msra.mxu0 %v899
    %917 = vmatpush.bf16.msra.mxu0 %v898
    %918 = vmatpush.bf16.msra.mxu0 %v897
    %919 = vmatpush.bf16.msra.mxu0 %v896
    %920 = vmatmul.bf16.gmra.mxu0 %v843
    %v921 = vpop.f32.mrf.mxu0
    %v922 = vadd.f32 %v862, %v921
    %v923 = vpop.f32.mrf.mxu0
    %924 = vdwg.mxu0
    %925 = vst [vmem:[#allocation10] sm:$0x3] %v922
    // Predicated region
    $region46: #{tpu_custom_call.1} parent=1 // pred_check
      _
    $region47: #{tpu_custom_call.1} parent=1 // pred_check_branch
      %927 = sbr.rel (0) target = $region49
    $region48: #{tpu_custom_call.1} parent=1 // pred_region
      %929 = vsyncadd [#allocation4], 0
      %s931 = sshll.u32 [#allocation10], 4
      %s932 = int_to_ptr.vmem [resolvable:$true] %s931
      %s933 = sshll.u32 %s7, 4
      %s934 = int_to_ptr.hbm [resolvable:$true] %s933
      %936 = dma.vmem_to_hbm [thread:$0]  %s932, 32, %s934, [#allocation4]
    $region49: #{tpu_custom_call.1} parent=1 // pred_fallthru
      _
    // Predicated region
    $region50: #{tpu_custom_call.1} parent=1 // pred_check
      _
    $region51: #{tpu_custom_call.1} parent=1 // pred_check_branch
      %938 = sbr.rel (0) target = $region53
    $region52: #{tpu_custom_call.1} parent=1 // pred_region
      %940 = dma.done [#allocation4], 32
    $region53: #{tpu_custom_call.1} parent=1 // pred_fallthru
      _
    %941 = vsyncpa [#allocation3], 1
    %942 = vsyncpa [#allocation6], 1
    %943 = vsyncpa [#allocation9], 1
    %944 = vsyncpa [#allocation4], 1

</llo_original>
